<compile_context>
chip_gen: v7x
topology: tpu7x:2x2x1
jax: 0.10.0
libtpu: 0.0.40
codegen_flags: <defaults>
</compile_context>

<pallas_src>
import functools

import jax
import jax.numpy as jnp
from jax.experimental import pallas as pl
from jax.experimental.pallas import tpu as pltpu


def _zeropad2d_kernel(x_ref, o_ref, *, pad):
    """Assemble the zero-padded tile in registers; store the full tile once."""
    if pad == 0:
        o_ref[...] = x_ref[...]
        return
    tb, h, w = x_ref.shape
    dt = o_ref.dtype
    x = x_ref[...].astype(dt)
    # Mirror the torch module: cat zeros along W, then along H.
    side = jnp.zeros((tb, h, pad), dt)
    mid = jnp.concatenate([side, x, side], axis=2)            # (tb, h, w + 2p)
    topbot = jnp.zeros((tb, pad, w + 2 * pad), dt)
    o_ref[...] = jnp.concatenate([topbot, mid, topbot], axis=1)


def _choose_batch_tile(B, H, W, pad, target_bytes=2 << 20):
    """Images per grid step: ~O(1-4 MiB)/step, and >=2 steps when B allows."""
    per_img = 4 * (H * W + (H + 2 * pad) * (W + 2 * pad))
    tb = int(max(1, min(B, target_bytes // max(per_img, 1))))
    while B % tb:                       # keep blocks evenly dividing B
        tb -= 1
    while tb > 1 and B // tb < 2:       # feed both v7x TensorCores if possible
        tb -= 1
        while B % tb:
            tb -= 1
    return tb


def zeropad2d(x: jax.Array, pad: int) -> jax.Array:
    """Pallas implementation of the ZeroPad2d module's forward pass."""
    assert pad >= 0
    B, H, W = x.shape
    H_out, W_out = H + 2 * pad, W + 2 * pad
    x = x.astype(jnp.float32)  # torch.zeros default dtype + cat promotes to f32

    tb = _choose_batch_tile(B, H, W, pad)
    per_step_bytes = 4 * tb * (H * W + H_out * W_out)
    # Double-buffered input + output blocks, plus slack; never below default.
    vmem_limit = int(min(128 << 20, max(32 << 20, 4 * per_step_bytes)))
    # TODO(synk): for very large single images whose whole-image block exceeds
    # v7x's 64 MiB VMEM, tile H into row bands (boundary bands carry pad rows).

    kernel = functools.partial(_zeropad2d_kernel, pad=pad)

    return pl.pallas_call(
        kernel,
        out_shape=jax.ShapeDtypeStruct((B, H_out, W_out), jnp.float32),
        grid_spec=pltpu.PrefetchScalarGridSpec(
            num_scalar_prefetch=0,
            grid=(B // tb,),
            in_specs=[pl.BlockSpec((tb, H, W), lambda b: (b, 0, 0))],
            out_specs=pl.BlockSpec((tb, H_out, W_out), lambda b: (b, 0, 0)),
        ),
        compiler_params=pltpu.CompilerParams(
            dimension_semantics=("parallel",),
            vmem_limit_bytes=vmem_limit,
        ),
        cost_estimate=pl.CostEstimate(
            flops=0,
            transcendentals=0,
            bytes_accessed=4 * (B * H * W + B * H_out * W_out),
        ),
    )(x)


if __name__ == "__main__":
    key = jax.random.PRNGKey(0)
    B, H, W = 2, 16, 16
    pad = 2

    x = jax.random.normal(key, (B, H, W), dtype=jnp.float32)

    out = jax.block_until_ready(zeropad2d(x, pad))

    # Reference check against jnp.pad (same semantics as the PyTorch module).
    ref = jnp.pad(x, ((0, 0), (pad, pad), (pad, pad)))
    assert out.shape == (B, H + 2 * pad, W + 2 * pad)
    assert out.dtype == jnp.float32
    assert jnp.allclose(out, ref), "mismatch vs reference zero-pad"

    print("KERNEL_OK")
</pallas_src>

<mosaic_0001>
module attributes {stable_mosaic.version = 11 : i64} {
  func.func @_zeropad2d_kernel(%arg0: i32, %arg1: memref<1x16x16xf32, #tpu.memory_space<vmem>>, %arg2: memref<1x20x20xf32, #tpu.memory_space<vmem>>) attributes {dimension_semantics = [#tpu.dimension_semantics<parallel>], iteration_bounds = array<i64: 2>, scalar_prefetch = 0 : i64, scratch_operands = 0 : i64, tpu.core_type = #tpu.core_type<tc>, window_params = [{transform_indices = @transform_0, window_bounds = array<i64: 1, 16, 16>}, {transform_indices = @transform_1, window_bounds = array<i64: 1, 20, 20>}]} {
    %c0 = arith.constant 0 : index
    %c0_0 = arith.constant 0 : index
    %c0_1 = arith.constant 0 : index
    %0 = vector.load %arg1[%c0, %c0_0, %c0_1] : memref<1x16x16xf32, #tpu.memory_space<vmem>>, vector<1x16x16xf32>
    %cst = arith.constant 0.000000e+00 : f32
    %1 = vector.broadcast %cst : f32 to vector<1x16x2xf32>
    %2 = tpu.concatenate %1, %0, %1 in 2 : vector<1x16x2xf32>, vector<1x16x16xf32>, vector<1x16x2xf32> -> vector<1x16x20xf32>
    %cst_2 = arith.constant 0.000000e+00 : f32
    %3 = vector.broadcast %cst_2 : f32 to vector<1x2x20xf32>
    %4 = tpu.concatenate %3, %2, %3 in 1 : vector<1x2x20xf32>, vector<1x16x20xf32>, vector<1x2x20xf32> -> vector<1x20x20xf32>
    %c0_3 = arith.constant 0 : index
    %c0_4 = arith.constant 0 : index
    %c0_5 = arith.constant 0 : index
    %5 = vector.load %arg2[%c0_3, %c0_4, %c0_5] : memref<1x20x20xf32, #tpu.memory_space<vmem>>, vector<1x20x20xf32>
    tpu.vector_store %arg2[%c0_3, %c0_4, %c0_5], %4 {strides = array<i32>} : memref<1x20x20xf32, #tpu.memory_space<vmem>>, vector<1x20x20xf32>,
    return
  }
  func.func @transform_0(%arg0: i32) -> (i32, i32, i32) {
    %c0_i32 = arith.constant 0 : i32
    %c0_i32_0 = arith.constant 0 : i32
    %c0_i32_1 = arith.constant 0 : i32
    return %arg0, %c0_i32, %c0_i32_0 : i32, i32, i32
  }
  func.func @transform_1(%arg0: i32) -> (i32, i32, i32) {
    %c0_i32 = arith.constant 0 : i32
    %c0_i32_0 = arith.constant 0 : i32
    %c0_i32_1 = arith.constant 0 : i32
    return %arg0, %c0_i32, %c0_i32_0 : i32, i32, i32
  }
}

</mosaic_0001>

<llo_original>
// kernel: tpu_custom_call.1
$region0: #{tpu_custom_call.1}
  #allocation0 [shape = 'u32[]', space=smem, size = 0x4, offset = 0x4, fixed_abs, tag = 'smem constant byte address 0x4 - core index']
  #allocation1 [shape = 'u32[144,128]{1,0:T(1,128)}', space=vmem, size = 0x12000, scoped, tag = 'internal scratch']
  %s0 = inlined_call_operand.hbm [shape: f32[2,16,16], index: 0, kind: input, shape index: {}]
  %s1 = inlined_call_operand.vmem [shape: f32[2,20,20], index: 1, kind: output, shape index: {}]
  %s2 = sld [smem:[#allocation0]]
  $region41: #{tpu_custom_call.1} parent=0
    _
  %s4 = ssub.s32 1, %s2
  %s5 = scalar_select 0, %s4, %s2
  $region1: #{tpu_custom_call.1} parent=0
    #allocation2 [shape = 'u8[16384]{0}', space=vmem, size = 0x4000, scoped, tag = 'input window, operand 0']
    #allocation3 [shape = 's32[2]{0}', space=sflag, size = 0x8, scoped, tag = 'scoped memory for tpu_custom_call.1']
    %6 = vsyncpa [#allocation3], 0
    %s7 = scalar_lea.sflag [#allocation3], 1
    %8 = vsyncpa %s7, 0
    loop: start=0, step=1, limit=4
    $region2: #{tpu_custom_call.1} parent=1 // loop_pre_header
      _
    $region3: #{tpu_custom_call.1} parent=1 // loop_header
      %s10 = sphi 0, %s14
      %p11 = scmp.ge.s32.totalorder %s10, 4
      %s20 = sphi 0, %s22
      %s23 = sphi 0, %s20
      %s24 = sphi 0, %s23
      %s40 = sphi 0, %s24
      %s46 = sphi 0, %s48
      %s49 = sphi 0, %s46
      %s50 = sphi 0, %s49
      %s66 = sphi 0, %s50
    $region4: #{tpu_custom_call.1} parent=1 // loop_header_branch
      %13 = sbr.rel (%p11) target = $region8
    $region5: #{tpu_custom_call.1} parent=1 // loop_body
      %s15 = ssub.s32 %s10, 1
      %s16 = ssub.s32 %s10, 2
      %s17 = sadd.s32 %s10, 1
      %s18 = ssub.s32 %s10, %s17
      %p19 = scmp.eq.s32.totalorder %s18, 0
      %s21 = sadd.s32 %s20, 1
      %s22 = scalar_select %p19, %s20, %s21
      %p25 = pneg %p19
      %p26 = scmp.eq.s32.totalorder %s10, 1
      %p27 = por %p25, %p26
      %p28 = scmp.ne.s32.totalorder %s20, %s23
      %p29 = scmp.eq.s32.totalorder %s10, 0
      %p30 = por %p28, %p29
      %p31 = scmp.ne.s32.totalorder %s20, %s23
      %p32 = scmp.eq.s32.totalorder %s15, 1
      %p33 = por %p31, %p32
      %p34 = scmp.ne.s32.totalorder %s23, %s24
      %p35 = scmp.eq.s32.totalorder %s15, 0
      %p36 = por %p34, %p35
      %p37 = scmp.ne.s32.totalorder %s23, %s24
      %p38 = scmp.eq.s32.totalorder %s16, 1
      %p39 = por %p37, %p38
      %p41 = scmp.ne.s32.totalorder %s24, %s40
      %p42 = scmp.eq.s32.totalorder %s16, 0
      %p43 = por %p41, %p42
      %s44 = ssub.s32 %s10, %s17
      %p45 = scmp.eq.s32.totalorder %s44, 0
      %s47 = sadd.s32 %s46, 1
      %s48 = scalar_select %p45, %s46, %s47
      %p51 = pneg %p45
      %p52 = scmp.eq.s32.totalorder %s10, 1
      %p53 = por %p51, %p52
      %p54 = scmp.ne.s32.totalorder %s46, %s49
      %p55 = scmp.eq.s32.totalorder %s10, 0
      %p56 = por %p54, %p55
      %p57 = scmp.ne.s32.totalorder %s46, %s49
      %p58 = scmp.eq.s32.totalorder %s15, 1
      %p59 = por %p57, %p58
      %p60 = scmp.ne.s32.totalorder %s49, %s50
      %p61 = scmp.eq.s32.totalorder %s15, 0
      %p62 = por %p60, %p61
      %p63 = scmp.ne.s32.totalorder %s49, %s50
      %p64 = scmp.eq.s32.totalorder %s16, 1
      %p65 = por %p63, %p64
      %p67 = scmp.ne.s32.totalorder %s50, %s66
      %p68 = scmp.eq.s32.totalorder %s16, 0
      %p69 = por %p67, %p68
      %p70 = scmp.le.s32.totalorder 1, %s10
      %p71 = scmp.lt.s32.totalorder %s10, 3
      %p72 = pnand %p70, %p71
      %p73 = pneg %p72
      // Predicated region
      $region9: #{tpu_custom_call.1} parent=5 // pred_check
        _
      $region10: #{tpu_custom_call.1} parent=5 // pred_check_branch
        %75 = sbr.rel (%p72) target = $region12
      $region11: #{tpu_custom_call.1} parent=5 // pred_region
        %s76 = ssub.s32 %s10, 1
      $region12: #{tpu_custom_call.1} parent=5 // pred_fallthru
        _
      %p77 = scmp.lt.s32.totalorder %s10, 2
      // Predicated region
      $region13: #{tpu_custom_call.1} parent=5 // pred_check
        %p78 = pneg %p77
      $region14: #{tpu_custom_call.1} parent=5 // pred_check_branch
        %80 = sbr.rel (%p78) target = $region16
      $region15: #{tpu_custom_call.1} parent=5 // pred_region
        // Predicated region
        $region17: #{tpu_custom_call.1} parent=15 // pred_check
          %p81 = pneg %p30
        $region18: #{tpu_custom_call.1} parent=15 // pred_check_branch
          %83 = sbr.rel (%p81) target = $region20
        $region19: #{tpu_custom_call.1} parent=15 // pred_region
          %s84 = sand.u32 %s20, 1
          %s85 = scalar_lea.sflag [#allocation3], %s84
          %s86 = sand.u32 %s20, 1
          %s87 = smul.addr %s86, 16
          %s88 = scalar_lea.vmem [#allocation2], %s87
          %s90 = ssub.s32 256, 256
          %91 = vsyncadd %s85, %s90
          %s92 = smul.addr %s10, 2
          %s93 = smul.addr %s92, 128
          %s94 = scalar_lea.hbm %s0, %s93
          %s95 = sshll.u32 %s88, 4
          %s96 = int_to_ptr.vmem [resolvable:$true] %s95
          %101 = dma.hbm_to_vmem [thread:$0]  %s94, 256, %s96, %s85, 128, 128, 8
        $region20: #{tpu_custom_call.1} parent=15 // pred_fallthru
          _
      $region16: #{tpu_custom_call.1} parent=5 // pred_fallthru
        _
      %p102 = scmp.le.s32.totalorder 1, %s10
      %p103 = scmp.lt.s32.totalorder %s10, 3
      %p104 = pnand %p102, %p103
      %p105 = pneg %p104
      // Predicated region
      $region21: #{tpu_custom_call.1} parent=5 // pred_check
        _
      $region22: #{tpu_custom_call.1} parent=5 // pred_check_branch
        %107 = sbr.rel (%p104) target = $region24
      $region23: #{tpu_custom_call.1} parent=5 // pred_region
        %s108 = ssub.s32 %s10, 1
        %s109 = sand.u32 %s23, 1
        %s110 = scalar_lea.sflag [#allocation3], %s109
        %s111 = sand.u32 %s23, 1
        %s112 = smul.addr %s111, 16
        %s113 = scalar_lea.vmem [#allocation2], %s112
        // Predicated region
        $region25: #{tpu_custom_call.1} parent=23 // pred_check
          %p114 = pneg %p36
        $region26: #{tpu_custom_call.1} parent=23 // pred_check_branch
          %116 = sbr.rel (%p114) target = $region28
        $region27: #{tpu_custom_call.1} parent=23 // pred_region
          %117 = dma.done %s110, 256
        $region28: #{tpu_custom_call.1} parent=23 // pred_fallthru
          _
        %s118 = sand.u32 %s23, 1
        %s119 = scalar_lea.sflag [#allocation3], %s118
        %s120 = sand.u32 %s23, 1
        %s121 = smul.addr %s120, 16
        %s122 = scalar_lea.vmem [#allocation2], %s121
        %p123 = pneg %p36
        %p124 = pneg %p33
        %p125 = pneg %p62
        %p126 = pneg %p59
        %p127 = scmp.lt.s32.totalorder %s15, 1
        %s128 = scalar_select %p127, %s15, 1
        %s129 = smul.addr %s128, 3
        %s130 = smul.addr %s129, 8
        %s131 = scalar_lea.vmem %s1, %s130
        %p132 = scmp.lt.s32.totalorder %s15, 1
        %s133 = scalar_select %p132, %s15, 1
        %s134 = smul.addr %s133, 3
        %s135 = smul.addr %s134, 8
        %s136 = scalar_lea.vmem %s1, %s135
        %v137 = vld [vmem:[%s113] sm:$0xff]
        %v138 = vld [vmem:[%s113 + $0x8] sm:$0xff]
        %141 = vrot.lane.b32.xlu0 %v137, 2
        %v142 = vpop.permute.xlu0 %141
        %143 = vrot.lane.b32.xlu0 %v138, 2
        %v144 = vpop.permute.xlu0 %143
        %vm147 = vcmask 15360
        %v148 = vsel %vm147, 0.0, %v142
        %v149 = vsel %vm147, 0.0, %v144
        %vm150 = vcmask 146432
        %v151 = vsel %vm150, %v148, 0.0
        %v152 = vsel %vm150, %v149, 0.0
        %vm155 = vcmask 1041408
        %v156 = vrot.slane %v151, 6
        %v157 = vrot.slane %v152, 6
        %v158 = vsel %vm155, %v156, %v157
        %v162 = vsel %vm155, 0.0, %v156
        %v163 = vsel %vm155, %v157, 0.0
        %vm164 = vcmask 162816
        %165 = vst.msk [vmem:[%s136] sm:$0xff] %vm164, %v162
        %166 = vst.msk [vmem:[%s136 + $0x8] sm:$0xff] %vm164, %v158
        %vm167 = vcmask 158720
        %168 = vst.msk [vmem:[%s136 + $0x10] sm:$0xf] %vm167, %v163
        %p169 = scmp.lt.s32.totalorder %s15, 1
        %s170 = scalar_select %p169, %s15, 1
        %s171 = smul.addr %s170, 3
        %s172 = smul.addr %s171, 8
        %s173 = scalar_lea.vmem %s1, %s172
        // Predicated region
        $region29: #{tpu_custom_call.1} parent=23 // pred_check
          %p174 = pneg %p59
        $region30: #{tpu_custom_call.1} parent=23 // pred_check_branch
          %176 = sbr.rel (%p174) target = $region32
        $region31: #{tpu_custom_call.1} parent=23 // pred_region
          _
        $region32: #{tpu_custom_call.1} parent=23 // pred_fallthru
          _
      $region24: #{tpu_custom_call.1} parent=5 // pred_fallthru
        _
      %p177 = scmp.le.s32.totalorder 2, %s10
      // Predicated region
      $region33: #{tpu_custom_call.1} parent=5 // pred_check
        %p178 = pneg %p177
      $region34: #{tpu_custom_call.1} parent=5 // pred_check_branch
        %180 = sbr.rel (%p178) target = $region36
      $region35: #{tpu_custom_call.1} parent=5 // pred_region
        %s181 = ssub.s32 %s10, 2
        // Predicated region
        $region37: #{tpu_custom_call.1} parent=35 // pred_check
          %p182 = pneg %p65
        $region38: #{tpu_custom_call.1} parent=35 // pred_check_branch
          %184 = sbr.rel (%p182) target = $region40
        $region39: #{tpu_custom_call.1} parent=35 // pred_region
          %p185 = scmp.lt.s32.totalorder %s16, 1
          %s186 = scalar_select %p185, %s16, 1
          %s187 = smul.addr %s186, 3
          %s188 = smul.addr %s187, 8
          %s189 = scalar_lea.vmem %s1, %s188
        $region40: #{tpu_custom_call.1} parent=35 // pred_fallthru
          _
      $region36: #{tpu_custom_call.1} parent=5 // pred_fallthru
        _
    $region6: #{tpu_custom_call.1} parent=1 // loop_footer
      %s14 = sadd.s32 1, %s10
    $region7: #{tpu_custom_call.1} parent=1 // loop_footer_branch
      %9 = sbr.rel target = $region3
    $region8: #{tpu_custom_call.1} parent=1 // loop_exit
      _
    %190 = vsyncpa [#allocation3], 1
    %s191 = scalar_lea.sflag [#allocation3], 1
    %192 = vsyncpa %s191, 1

</llo_original>
